<compile_context>
chip_gen: v6e
topology: v6e:2x2x1
jax: 0.10.0
libtpu: 0.0.40
codegen_flags: <defaults>
</compile_context>

<pallas_src>
import jax
import jax.numpy as jnp
from jax import lax
from jax.experimental import pallas as pl
from jax.experimental.pallas import tpu as pltpu

LN_EPS = 1e-5          # PyTorch nn.LayerNorm default eps
GATHER_DEPTH = 8       # in-flight token-row DMAs (power of two)


def _pick_ts(S, cap=512):
    """Largest multiple-of-8 tile of sequence rows that divides S (so no padding)."""
    assert S % 8 == 0, "seq_len must be a multiple of 8 for this kernel"
    best = 8
    for t in range(8, min(S, cap) + 1, 8):
        if S % t == 0:
            best = t
    return best


def bert_embedding(x, seg, tok_table, seg_table, pos_table, gamma, beta, *, ts_cap=512):
    B, S = x.shape
    V, H = tok_table.shape
    NS = seg_table.shape[0]
    L = pos_table.shape[0]
    assert L >= S, "pos_table must cover the sequence length"
    assert H % 128 == 0, "hidden size must be a multiple of the 128-lane width"

    TS = _pick_ts(S, ts_cap)          # rows of the sequence handled per grid step
    s_tiles = S // TS
    DEPTH = GATHER_DEPTH              # TS >= 8 == DEPTH always holds

    tok_ids = x.reshape(-1).astype(jnp.int32)            # (B*S,) -> SMEM scalar prefetch
    seg_ids = seg.reshape(B, S, 1).astype(jnp.int32)     # (B, S, 1) -> (TS, 1) VMEM blocks

    def kernel(tok_ids_smem,            # (B*S,) int32, SMEM (scalar prefetch)
               seg_ids_ref,             # (TS, 1) int32 block
               tok_hbm,                 # (V, H) f32, stays in HBM (pl.ANY)
               pos_ref,                 # (TS, H) f32: static slice of pos_table
               seg_tab_ref,             # (NS, H) f32, VMEM-resident (tiny)
               gamma_ref, beta_ref,     # (1, H) f32
               out_ref,                 # (TS, H) output tile
               tok_buf,                 # (TS, H) f32 scratch: gathered token rows
               sems):                   # (DEPTH,) DMA semaphores
        b = pl.program_id(0)
        s = pl.program_id(1)
        base = b * S + s * TS           # first flattened row of this tile

        def start_row(r, slot):
            tid = tok_ids_smem[base + r]
            tid = jnp.minimum(jnp.maximum(tid, 0), V - 1)   # guard against OOB HBM DMA
            pltpu.make_async_copy(tok_hbm.at[tid], tok_buf.at[r], sems.at[slot]).start()

        # Prime DEPTH token-row gather DMAs (HBM -> VMEM staging buffer).
        for d in range(DEPTH):
            start_row(d, d)

        # While the gathers are in flight: segment embedding via a VPU select over the
        # NS resident rows (no matmul), plus the pipelined positional slice.
        seg_ids_col = seg_ids_ref[...]                                       # (TS, 1)
        seg_e = jnp.broadcast_to(seg_tab_ref[0:1, :], (TS, H))
        for r_seg in range(1, NS):
            seg_e = jnp.where(seg_ids_col == r_seg,
                              seg_tab_ref[r_seg:r_seg + 1, :], seg_e)
        e = pos_ref[...] + seg_e                                             # f32 (TS, H)

        # Drain the gather pipeline, keeping DEPTH row copies in flight.
        @pl.loop(0, TS)
        def _(r):
            slot = r % DEPTH
            # Wait for row r (dummy src .at[0] only provides the transfer shape).
            pltpu.make_async_copy(tok_hbm.at[0], tok_buf.at[r], sems.at[slot]).wait()

            @pl.when(r + DEPTH < TS)
            def _():
                start_row(r + DEPTH, slot)

        e = e + tok_buf[...]

        # Fused LayerNorm over the hidden dim (f32, biased variance, rsqrt on the EUP).
        mean = jnp.mean(e, axis=-1, keepdims=True)
        cent = e - mean
        var = jnp.mean(cent * cent, axis=-1, keepdims=True)
        normed = cent * lax.rsqrt(var + LN_EPS)
        out_ref[...] = (normed * gamma_ref[...] + beta_ref[...]).astype(out_ref.dtype)

    grid_spec = pltpu.PrefetchScalarGridSpec(
        num_scalar_prefetch=1,
        grid=(B, s_tiles),
        in_specs=[
            pl.BlockSpec((None, TS, 1), lambda b, s, ids: (b, s, 0)),   # segment ids
            pl.BlockSpec(memory_space=pl.ANY),                          # token table in HBM
            pl.BlockSpec((TS, H), lambda b, s, ids: (s, 0)),            # positional rows (static slice)
            pl.BlockSpec((NS, H), lambda b, s, ids: (0, 0)),            # tiny resident segment table
            pl.BlockSpec((1, H), lambda b, s, ids: (0, 0)),             # gamma
            pl.BlockSpec((1, H), lambda b, s, ids: (0, 0)),             # beta
        ],
        out_specs=pl.BlockSpec((None, TS, H), lambda b, s, ids: (b, s, 0)),
        scratch_shapes=[
            pltpu.VMEM((TS, H), jnp.float32),
            pltpu.SemaphoreType.DMA((DEPTH,)),
        ],
    )

    return pl.pallas_call(
        kernel,
        out_shape=jax.ShapeDtypeStruct((B, S, H), jnp.float32),
        grid_spec=grid_spec,
        compiler_params=pltpu.CompilerParams(
            dimension_semantics=("parallel", "parallel")),  # independent tiles -> 2 TCs on v7x
    )(tok_ids, seg_ids, tok_table, pos_table, seg_table,
      gamma.reshape(1, H), beta.reshape(1, H))


if __name__ == "__main__":
    # Small, deterministic config consistent with the module's __init__
    vocab_size, num_hiddens, n_segments, max_len = 50, 128, 2, 16
    B, S = 2, 8

    key = jax.random.PRNGKey(0)
    k1, k2, k3, k4, k5 = jax.random.split(key, 5)

    # Parameter init (nn.Embedding ~ N(0,1); nn.LayerNorm gamma=1, beta=0)
    tok_table = jax.random.normal(k1, (vocab_size, num_hiddens), jnp.float32)
    seg_table = jax.random.normal(k2, (n_segments, num_hiddens), jnp.float32)
    pos_table = jax.random.normal(k3, (max_len, num_hiddens), jnp.float32)
    gamma = jnp.ones((num_hiddens,), jnp.float32)
    beta = jnp.zeros((num_hiddens,), jnp.float32)

    x = jax.random.randint(k4, (B, S), 0, vocab_size, dtype=jnp.int32)
    seg = jax.random.randint(k5, (B, S), 0, n_segments, dtype=jnp.int32)

    out = bert_embedding(x, seg, tok_table, seg_table, pos_table, gamma, beta)
    out = jax.block_until_ready(out)

    # Pure-JAX reference for a sanity check
    emb = tok_table[x] + pos_table[jnp.arange(S)][None, :, :] + seg_table[seg]
    mean = emb.mean(-1, keepdims=True)
    var = ((emb - mean) ** 2).mean(-1, keepdims=True)
    ref = (emb - mean) / jnp.sqrt(var + LN_EPS) * gamma + beta

    assert out.shape == (B, S, num_hiddens)
    assert jnp.allclose(out, ref, atol=1e-4, rtol=1e-4)
    print("KERNEL_OK")
</pallas_src>

<mosaic_0001>
module attributes {stable_mosaic.version = 11 : i64} {
  func.func @kernel(%arg0: i32, %arg1: i32, %arg2: memref<16xi32, #tpu.memory_space<smem>>, %arg3: memref<1x8x1xi32, #tpu.memory_space<vmem>>, %arg4: memref<50x128xf32, #tpu.memory_space<any>>, %arg5: memref<8x128xf32, #tpu.memory_space<vmem>>, %arg6: memref<2x128xf32, #tpu.memory_space<vmem>>, %arg7: memref<1x128xf32, #tpu.memory_space<vmem>>, %arg8: memref<1x128xf32, #tpu.memory_space<vmem>>, %arg9: memref<1x8x128xf32, #tpu.memory_space<vmem>>, %arg10: memref<8x128xf32, #tpu.memory_space<vmem>>, %arg11: memref<8x!tpu.dma_semaphore, #tpu.memory_space<semaphore_mem>>) attributes {dimension_semantics = [#tpu.dimension_semantics<parallel>, #tpu.dimension_semantics<parallel>], iteration_bounds = array<i64: 2, 1>, scalar_prefetch = 1 : i64, scratch_operands = 2 : i64, tpu.core_type = #tpu.core_type<tc>, window_params = [{transform_indices = @transform_0, window_bounds = array<i64: 1, 8, 1>}, {}, {transform_indices = @transform_2, window_bounds = array<i64: 8, 128>}, {pipeline_mode = #tpu.pipeline_mode<synchronous>, transform_indices = @transform_3, window_bounds = array<i64: 2, 128>}, {pipeline_mode = #tpu.pipeline_mode<synchronous>, transform_indices = @transform_4, window_bounds = array<i64: 1, 128>}, {pipeline_mode = #tpu.pipeline_mode<synchronous>, transform_indices = @transform_5, window_bounds = array<i64: 1, 128>}, {transform_indices = @transform_6, window_bounds = array<i64: 1, 8, 128>}]} {
    %c8_i32 = arith.constant 8 : i32
    %0 = arith.muli %arg0, %c8_i32 : i32
    %c8_i32_0 = arith.constant 8 : i32
    %1 = arith.muli %arg1, %c8_i32_0 : i32
    %2 = arith.addi %0, %1 : i32
    %c0_i32 = arith.constant 0 : i32
    %3 = arith.addi %2, %c0_i32 : i32
    %4 = arith.index_cast %3 : i32 to index
    %5 = memref.load %arg2[%4] : memref<16xi32, #tpu.memory_space<smem>>
    %c0_i32_1 = arith.constant 0 : i32
    %6 = arith.maxsi %5, %c0_i32_1 : i32
    %c49_i32 = arith.constant 49 : i32
    %7 = arith.minsi %6, %c49_i32 : i32
    %c0_i32_2 = arith.constant 0 : i32
    %c0_i32_3 = arith.constant 0 : i32
    %c0_i32_4 = arith.constant 0 : i32
    %8 = tpu.memref_slice %arg4[%7, %c0_i32_4] : memref<50x128xf32, #tpu.memory_space<any>> -> memref<1x128xf32, #tpu.memory_space<any>>
    %9 = tpu.memref_squeeze %8 : memref<1x128xf32, #tpu.memory_space<any>> -> memref<128xf32, #tpu.memory_space<any>>
    %c0_i32_5 = arith.constant 0 : i32
    %10 = tpu.memref_slice %arg10[%c0_i32_2, %c0_i32_5] : memref<8x128xf32, #tpu.memory_space<vmem>> -> memref<1x128xf32, #tpu.memory_space<vmem>>
    %11 = tpu.memref_squeeze %10 : memref<1x128xf32, #tpu.memory_space<vmem>> -> memref<128xf32, #tpu.memory_space<vmem>>
    %12 = tpu.memref_slice %arg11[%c0_i32_3] : memref<8x!tpu.dma_semaphore, #tpu.memory_space<semaphore_mem>> -> memref<1x!tpu.dma_semaphore, #tpu.memory_space<semaphore_mem>>
    %13 = tpu.memref_squeeze %12 : memref<1x!tpu.dma_semaphore, #tpu.memory_space<semaphore_mem>> -> memref<!tpu.dma_semaphore, #tpu.memory_space<semaphore_mem>>
    tpu.enqueue_dma source(%9 : memref<128xf32, #tpu.memory_space<any>>) target(%11 : memref<128xf32, #tpu.memory_space<vmem>>) target_semaphore(%13 : memref<!tpu.dma_semaphore, #tpu.memory_space<semaphore_mem>>)
    %c1_i32 = arith.constant 1 : i32
    %14 = arith.addi %2, %c1_i32 : i32
    %15 = arith.index_cast %14 : i32 to index
    %16 = memref.load %arg2[%15] : memref<16xi32, #tpu.memory_space<smem>>
    %c0_i32_6 = arith.constant 0 : i32
    %17 = arith.maxsi %16, %c0_i32_6 : i32
    %c49_i32_7 = arith.constant 49 : i32
    %18 = arith.minsi %17, %c49_i32_7 : i32
    %c1_i32_8 = arith.constant 1 : i32
    %c1_i32_9 = arith.constant 1 : i32
    %c0_i32_10 = arith.constant 0 : i32
    %19 = tpu.memref_slice %arg4[%18, %c0_i32_10] : memref<50x128xf32, #tpu.memory_space<any>> -> memref<1x128xf32, #tpu.memory_space<any>>
    %20 = tpu.memref_squeeze %19 : memref<1x128xf32, #tpu.memory_space<any>> -> memref<128xf32, #tpu.memory_space<any>>
    %c0_i32_11 = arith.constant 0 : i32
    %21 = tpu.memref_slice %arg10[%c1_i32_8, %c0_i32_11] : memref<8x128xf32, #tpu.memory_space<vmem>> -> memref<1x128xf32, #tpu.memory_space<vmem>>
    %22 = tpu.memref_squeeze %21 : memref<1x128xf32, #tpu.memory_space<vmem>> -> memref<128xf32, #tpu.memory_space<vmem>>
    %23 = tpu.memref_slice %arg11[%c1_i32_9] : memref<8x!tpu.dma_semaphore, #tpu.memory_space<semaphore_mem>> -> memref<1x!tpu.dma_semaphore, #tpu.memory_space<semaphore_mem>>
    %24 = tpu.memref_squeeze %23 : memref<1x!tpu.dma_semaphore, #tpu.memory_space<semaphore_mem>> -> memref<!tpu.dma_semaphore, #tpu.memory_space<semaphore_mem>>
    tpu.enqueue_dma source(%20 : memref<128xf32, #tpu.memory_space<any>>) target(%22 : memref<128xf32, #tpu.memory_space<vmem>>) target_semaphore(%24 : memref<!tpu.dma_semaphore, #tpu.memory_space<semaphore_mem>>)
    %c2_i32 = arith.constant 2 : i32
    %25 = arith.addi %2, %c2_i32 : i32
    %26 = arith.index_cast %25 : i32 to index
    %27 = memref.load %arg2[%26] : memref<16xi32, #tpu.memory_space<smem>>
    %c0_i32_12 = arith.constant 0 : i32
    %28 = arith.maxsi %27, %c0_i32_12 : i32
    %c49_i32_13 = arith.constant 49 : i32
    %29 = arith.minsi %28, %c49_i32_13 : i32
    %c2_i32_14 = arith.constant 2 : i32
    %c2_i32_15 = arith.constant 2 : i32
    %c0_i32_16 = arith.constant 0 : i32
    %30 = tpu.memref_slice %arg4[%29, %c0_i32_16] : memref<50x128xf32, #tpu.memory_space<any>> -> memref<1x128xf32, #tpu.memory_space<any>>
    %31 = tpu.memref_squeeze %30 : memref<1x128xf32, #tpu.memory_space<any>> -> memref<128xf32, #tpu.memory_space<any>>
    %c0_i32_17 = arith.constant 0 : i32
    %32 = tpu.memref_slice %arg10[%c2_i32_14, %c0_i32_17] : memref<8x128xf32, #tpu.memory_space<vmem>> -> memref<1x128xf32, #tpu.memory_space<vmem>>
    %33 = tpu.memref_squeeze %32 : memref<1x128xf32, #tpu.memory_space<vmem>> -> memref<128xf32, #tpu.memory_space<vmem>>
    %34 = tpu.memref_slice %arg11[%c2_i32_15] : memref<8x!tpu.dma_semaphore, #tpu.memory_space<semaphore_mem>> -> memref<1x!tpu.dma_semaphore, #tpu.memory_space<semaphore_mem>>
    %35 = tpu.memref_squeeze %34 : memref<1x!tpu.dma_semaphore, #tpu.memory_space<semaphore_mem>> -> memref<!tpu.dma_semaphore, #tpu.memory_space<semaphore_mem>>
    tpu.enqueue_dma source(%31 : memref<128xf32, #tpu.memory_space<any>>) target(%33 : memref<128xf32, #tpu.memory_space<vmem>>) target_semaphore(%35 : memref<!tpu.dma_semaphore, #tpu.memory_space<semaphore_mem>>)
    %c3_i32 = arith.constant 3 : i32
    %36 = arith.addi %2, %c3_i32 : i32
    %37 = arith.index_cast %36 : i32 to index
    %38 = memref.load %arg2[%37] : memref<16xi32, #tpu.memory_space<smem>>
    %c0_i32_18 = arith.constant 0 : i32
    %39 = arith.maxsi %38, %c0_i32_18 : i32
    %c49_i32_19 = arith.constant 49 : i32
    %40 = arith.minsi %39, %c49_i32_19 : i32
    %c3_i32_20 = arith.constant 3 : i32
    %c3_i32_21 = arith.constant 3 : i32
    %c0_i32_22 = arith.constant 0 : i32
    %41 = tpu.memref_slice %arg4[%40, %c0_i32_22] : memref<50x128xf32, #tpu.memory_space<any>> -> memref<1x128xf32, #tpu.memory_space<any>>
    %42 = tpu.memref_squeeze %41 : memref<1x128xf32, #tpu.memory_space<any>> -> memref<128xf32, #tpu.memory_space<any>>
    %c0_i32_23 = arith.constant 0 : i32
    %43 = tpu.memref_slice %arg10[%c3_i32_20, %c0_i32_23] : memref<8x128xf32, #tpu.memory_space<vmem>> -> memref<1x128xf32, #tpu.memory_space<vmem>>
    %44 = tpu.memref_squeeze %43 : memref<1x128xf32, #tpu.memory_space<vmem>> -> memref<128xf32, #tpu.memory_space<vmem>>
    %45 = tpu.memref_slice %arg11[%c3_i32_21] : memref<8x!tpu.dma_semaphore, #tpu.memory_space<semaphore_mem>> -> memref<1x!tpu.dma_semaphore, #tpu.memory_space<semaphore_mem>>
    %46 = tpu.memref_squeeze %45 : memref<1x!tpu.dma_semaphore, #tpu.memory_space<semaphore_mem>> -> memref<!tpu.dma_semaphore, #tpu.memory_space<semaphore_mem>>
    tpu.enqueue_dma source(%42 : memref<128xf32, #tpu.memory_space<any>>) target(%44 : memref<128xf32, #tpu.memory_space<vmem>>) target_semaphore(%46 : memref<!tpu.dma_semaphore, #tpu.memory_space<semaphore_mem>>)
    %c4_i32 = arith.constant 4 : i32
    %47 = arith.addi %2, %c4_i32 : i32
    %48 = arith.index_cast %47 : i32 to index
    %49 = memref.load %arg2[%48] : memref<16xi32, #tpu.memory_space<smem>>
    %c0_i32_24 = arith.constant 0 : i32
    %50 = arith.maxsi %49, %c0_i32_24 : i32
    %c49_i32_25 = arith.constant 49 : i32
    %51 = arith.minsi %50, %c49_i32_25 : i32
    %c4_i32_26 = arith.constant 4 : i32
    %c4_i32_27 = arith.constant 4 : i32
    %c0_i32_28 = arith.constant 0 : i32
    %52 = tpu.memref_slice %arg4[%51, %c0_i32_28] : memref<50x128xf32, #tpu.memory_space<any>> -> memref<1x128xf32, #tpu.memory_space<any>>
    %53 = tpu.memref_squeeze %52 : memref<1x128xf32, #tpu.memory_space<any>> -> memref<128xf32, #tpu.memory_space<any>>
    %c0_i32_29 = arith.constant 0 : i32
    %54 = tpu.memref_slice %arg10[%c4_i32_26, %c0_i32_29] : memref<8x128xf32, #tpu.memory_space<vmem>> -> memref<1x128xf32, #tpu.memory_space<vmem>>
    %55 = tpu.memref_squeeze %54 : memref<1x128xf32, #tpu.memory_space<vmem>> -> memref<128xf32, #tpu.memory_space<vmem>>
    %56 = tpu.memref_slice %arg11[%c4_i32_27] : memref<8x!tpu.dma_semaphore, #tpu.memory_space<semaphore_mem>> -> memref<1x!tpu.dma_semaphore, #tpu.memory_space<semaphore_mem>>
    %57 = tpu.memref_squeeze %56 : memref<1x!tpu.dma_semaphore, #tpu.memory_space<semaphore_mem>> -> memref<!tpu.dma_semaphore, #tpu.memory_space<semaphore_mem>>
    tpu.enqueue_dma source(%53 : memref<128xf32, #tpu.memory_space<any>>) target(%55 : memref<128xf32, #tpu.memory_space<vmem>>) target_semaphore(%57 : memref<!tpu.dma_semaphore, #tpu.memory_space<semaphore_mem>>)
    %c5_i32 = arith.constant 5 : i32
    %58 = arith.addi %2, %c5_i32 : i32
    %59 = arith.index_cast %58 : i32 to index
    %60 = memref.load %arg2[%59] : memref<16xi32, #tpu.memory_space<smem>>
    %c0_i32_30 = arith.constant 0 : i32
    %61 = arith.maxsi %60, %c0_i32_30 : i32
    %c49_i32_31 = arith.constant 49 : i32
    %62 = arith.minsi %61, %c49_i32_31 : i32
    %c5_i32_32 = arith.constant 5 : i32
    %c5_i32_33 = arith.constant 5 : i32
    %c0_i32_34 = arith.constant 0 : i32
    %63 = tpu.memref_slice %arg4[%62, %c0_i32_34] : memref<50x128xf32, #tpu.memory_space<any>> -> memref<1x128xf32, #tpu.memory_space<any>>
    %64 = tpu.memref_squeeze %63 : memref<1x128xf32, #tpu.memory_space<any>> -> memref<128xf32, #tpu.memory_space<any>>
    %c0_i32_35 = arith.constant 0 : i32
    %65 = tpu.memref_slice %arg10[%c5_i32_32, %c0_i32_35] : memref<8x128xf32, #tpu.memory_space<vmem>> -> memref<1x128xf32, #tpu.memory_space<vmem>>
    %66 = tpu.memref_squeeze %65 : memref<1x128xf32, #tpu.memory_space<vmem>> -> memref<128xf32, #tpu.memory_space<vmem>>
    %67 = tpu.memref_slice %arg11[%c5_i32_33] : memref<8x!tpu.dma_semaphore, #tpu.memory_space<semaphore_mem>> -> memref<1x!tpu.dma_semaphore, #tpu.memory_space<semaphore_mem>>
    %68 = tpu.memref_squeeze %67 : memref<1x!tpu.dma_semaphore, #tpu.memory_space<semaphore_mem>> -> memref<!tpu.dma_semaphore, #tpu.memory_space<semaphore_mem>>
    tpu.enqueue_dma source(%64 : memref<128xf32, #tpu.memory_space<any>>) target(%66 : memref<128xf32, #tpu.memory_space<vmem>>) target_semaphore(%68 : memref<!tpu.dma_semaphore, #tpu.memory_space<semaphore_mem>>)
    %c6_i32 = arith.constant 6 : i32
    %69 = arith.addi %2, %c6_i32 : i32
    %70 = arith.index_cast %69 : i32 to index
    %71 = memref.load %arg2[%70] : memref<16xi32, #tpu.memory_space<smem>>
    %c0_i32_36 = arith.constant 0 : i32
    %72 = arith.maxsi %71, %c0_i32_36 : i32
    %c49_i32_37 = arith.constant 49 : i32
    %73 = arith.minsi %72, %c49_i32_37 : i32
    %c6_i32_38 = arith.constant 6 : i32
    %c6_i32_39 = arith.constant 6 : i32
    %c0_i32_40 = arith.constant 0 : i32
    %74 = tpu.memref_slice %arg4[%73, %c0_i32_40] : memref<50x128xf32, #tpu.memory_space<any>> -> memref<1x128xf32, #tpu.memory_space<any>>
    %75 = tpu.memref_squeeze %74 : memref<1x128xf32, #tpu.memory_space<any>> -> memref<128xf32, #tpu.memory_space<any>>
    %c0_i32_41 = arith.constant 0 : i32
    %76 = tpu.memref_slice %arg10[%c6_i32_38, %c0_i32_41] : memref<8x128xf32, #tpu.memory_space<vmem>> -> memref<1x128xf32, #tpu.memory_space<vmem>>
    %77 = tpu.memref_squeeze %76 : memref<1x128xf32, #tpu.memory_space<vmem>> -> memref<128xf32, #tpu.memory_space<vmem>>
    %78 = tpu.memref_slice %arg11[%c6_i32_39] : memref<8x!tpu.dma_semaphore, #tpu.memory_space<semaphore_mem>> -> memref<1x!tpu.dma_semaphore, #tpu.memory_space<semaphore_mem>>
    %79 = tpu.memref_squeeze %78 : memref<1x!tpu.dma_semaphore, #tpu.memory_space<semaphore_mem>> -> memref<!tpu.dma_semaphore, #tpu.memory_space<semaphore_mem>>
    tpu.enqueue_dma source(%75 : memref<128xf32, #tpu.memory_space<any>>) target(%77 : memref<128xf32, #tpu.memory_space<vmem>>) target_semaphore(%79 : memref<!tpu.dma_semaphore, #tpu.memory_space<semaphore_mem>>)
    %c7_i32 = arith.constant 7 : i32
    %80 = arith.addi %2, %c7_i32 : i32
    %81 = arith.index_cast %80 : i32 to index
    %82 = memref.load %arg2[%81] : memref<16xi32, #tpu.memory_space<smem>>
    %c0_i32_42 = arith.constant 0 : i32
    %83 = arith.maxsi %82, %c0_i32_42 : i32
    %c49_i32_43 = arith.constant 49 : i32
    %84 = arith.minsi %83, %c49_i32_43 : i32
    %c7_i32_44 = arith.constant 7 : i32
    %c7_i32_45 = arith.constant 7 : i32
    %c0_i32_46 = arith.constant 0 : i32
    %85 = tpu.memref_slice %arg4[%84, %c0_i32_46] : memref<50x128xf32, #tpu.memory_space<any>> -> memref<1x128xf32, #tpu.memory_space<any>>
    %86 = tpu.memref_squeeze %85 : memref<1x128xf32, #tpu.memory_space<any>> -> memref<128xf32, #tpu.memory_space<any>>
    %c0_i32_47 = arith.constant 0 : i32
    %87 = tpu.memref_slice %arg10[%c7_i32_44, %c0_i32_47] : memref<8x128xf32, #tpu.memory_space<vmem>> -> memref<1x128xf32, #tpu.memory_space<vmem>>
    %88 = tpu.memref_squeeze %87 : memref<1x128xf32, #tpu.memory_space<vmem>> -> memref<128xf32, #tpu.memory_space<vmem>>
    %89 = tpu.memref_slice %arg11[%c7_i32_45] : memref<8x!tpu.dma_semaphore, #tpu.memory_space<semaphore_mem>> -> memref<1x!tpu.dma_semaphore, #tpu.memory_space<semaphore_mem>>
    %90 = tpu.memref_squeeze %89 : memref<1x!tpu.dma_semaphore, #tpu.memory_space<semaphore_mem>> -> memref<!tpu.dma_semaphore, #tpu.memory_space<semaphore_mem>>
    tpu.enqueue_dma source(%86 : memref<128xf32, #tpu.memory_space<any>>) target(%88 : memref<128xf32, #tpu.memory_space<vmem>>) target_semaphore(%90 : memref<!tpu.dma_semaphore, #tpu.memory_space<semaphore_mem>>)
    %c0 = arith.constant 0 : index
    %c0_48 = arith.constant 0 : index
    %c0_49 = arith.constant 0 : index
    %91 = vector.load %arg3[%c0, %c0_48, %c0_49] : memref<1x8x1xi32, #tpu.memory_space<vmem>>, vector<1x8x1xi32>
    %92 = vector.shape_cast %91 : vector<1x8x1xi32> to vector<8x1xi32>
    %c0_50 = arith.constant 0 : index
    %c0_51 = arith.constant 0 : index
    %93 = vector.load %arg6[%c0_50, %c0_51] : memref<2x128xf32, #tpu.memory_space<vmem>>, vector<1x128xf32>
    %94 = vector.shape_cast %93 : vector<1x128xf32> to vector<1x128xf32>
    %95 = vector.broadcast %94 : vector<1x128xf32> to vector<8x128xf32>
    %c1_i32_52 = arith.constant 1 : i32
    %96 = vector.broadcast %c1_i32_52 : i32 to vector<8x1xi32>
    %97 = arith.cmpi eq, %92, %96 : vector<8x1xi32>
    %c1 = arith.constant 1 : index
    %c0_53 = arith.constant 0 : index
    %98 = vector.load %arg6[%c1, %c0_53] : memref<2x128xf32, #tpu.memory_space<vmem>>, vector<1x128xf32>
    %99 = vector.shape_cast %97 : vector<8x1xi1> to vector<8x1xi1>
    %100 = vector.broadcast %99 : vector<8x1xi1> to vector<8x128xi1>
    %101 = vector.shape_cast %98 : vector<1x128xf32> to vector<1x128xf32>
    %102 = vector.broadcast %101 : vector<1x128xf32> to vector<8x128xf32>
    %103 = arith.select %100, %102, %95 : vector<8x128xi1>, vector<8x128xf32>
    %c0_54 = arith.constant 0 : index
    %c0_55 = arith.constant 0 : index
    %104 = vector.load %arg5[%c0_54, %c0_55] : memref<8x128xf32, #tpu.memory_space<vmem>>, vector<8x128xf32>
    %105 = arith.addf %104, %103 : vector<8x128xf32>
    %c0_i32_56 = arith.constant 0 : i32
    %c8_i32_57 = arith.constant 8 : i32
    %106 = arith.addi %c0_i32_56, %c8_i32_57 : i32
    %c1_i32_58 = arith.constant 1 : i32
    scf.for %arg12 = %c0_i32_56 to %106 step %c1_i32_58  : i32 {
      %c1_i32_73 = arith.constant 1 : i32
      %134 = arith.muli %arg12, %c1_i32_73 : i32
      %c0_i32_74 = arith.constant 0 : i32
      %135 = arith.addi %c0_i32_74, %134 : i32
      %c8_i32_75 = arith.constant 8 : i32
      %c0_i32_76 = arith.constant 0 : i32
      %136 = arith.cmpi eq, %c8_i32_75, %c0_i32_76 : i32
      %c1_i32_77 = arith.constant 1 : i32
      %137 = arith.select %136, %c1_i32_77, %c8_i32_75 : i32
      %138 = arith.remsi %135, %137 : i32
      %c0_i32_78 = arith.constant 0 : i32
      %139 = arith.cmpi ne, %138, %c0_i32_78 : i32
      %c0_i32_79 = arith.constant 0 : i32
      %140 = arith.cmpi slt, %138, %c0_i32_79 : i32
      %c0_i32_80 = arith.constant 0 : i32
      %141 = arith.cmpi slt, %137, %c0_i32_80 : i32
      %142 = arith.xori %140, %141 : i1
      %143 = arith.andi %142, %139 : i1
      %144 = arith.addi %138, %137 : i32
      %145 = arith.select %143, %144, %138 : i32
      %c0_i32_81 = arith.constant 0 : i32
      %c0_i32_82 = arith.constant 0 : i32
      %146 = tpu.memref_slice %arg4[%c0_i32_81, %c0_i32_82] : memref<50x128xf32, #tpu.memory_space<any>> -> memref<1x128xf32, #tpu.memory_space<any>>
      %147 = tpu.memref_squeeze %146 : memref<1x128xf32, #tpu.memory_space<any>> -> memref<128xf32, #tpu.memory_space<any>>
      %c0_i32_83 = arith.constant 0 : i32
      %148 = tpu.memref_slice %arg10[%135, %c0_i32_83] : memref<8x128xf32, #tpu.memory_space<vmem>> -> memref<1x128xf32, #tpu.memory_space<vmem>>
      %149 = tpu.memref_squeeze %148 : memref<1x128xf32, #tpu.memory_space<vmem>> -> memref<128xf32, #tpu.memory_space<vmem>>
      %150 = tpu.memref_slice %arg11[%145] : memref<8x!tpu.dma_semaphore, #tpu.memory_space<semaphore_mem>> -> memref<1x!tpu.dma_semaphore, #tpu.memory_space<semaphore_mem>>
      %151 = tpu.memref_squeeze %150 : memref<1x!tpu.dma_semaphore, #tpu.memory_space<semaphore_mem>> -> memref<!tpu.dma_semaphore, #tpu.memory_space<semaphore_mem>>
      tpu.wait_dma2 semaphore(%151 : memref<!tpu.dma_semaphore, #tpu.memory_space<semaphore_mem>>) src(%147 : memref<128xf32, #tpu.memory_space<any>>) dst(%149 : memref<128xf32, #tpu.memory_space<vmem>>)
      %c8_i32_84 = arith.constant 8 : i32
      %152 = arith.addi %135, %c8_i32_84 : i32
      %c8_i32_85 = arith.constant 8 : i32
      %153 = arith.cmpi slt, %152, %c8_i32_85 : i32
      %154 = arith.extui %153 : i1 to i32
      %c0_i32_86 = arith.constant 0 : i32
      %155 = arith.cmpi ne, %154, %c0_i32_86 : i32
      scf.if %155 {
        %c8_i32_87 = arith.constant 8 : i32
        %156 = arith.addi %135, %c8_i32_87 : i32
        %157 = arith.addi %2, %156 : i32
        %158 = arith.index_cast %157 : i32 to index
        %159 = memref.load %arg2[%158] : memref<16xi32, #tpu.memory_space<smem>>
        %c0_i32_88 = arith.constant 0 : i32
        %160 = arith.maxsi %159, %c0_i32_88 : i32
        %c49_i32_89 = arith.constant 49 : i32
        %161 = arith.minsi %160, %c49_i32_89 : i32
        %c0_i32_90 = arith.constant 0 : i32
        %162 = tpu.memref_slice %arg4[%161, %c0_i32_90] : memref<50x128xf32, #tpu.memory_space<any>> -> memref<1x128xf32, #tpu.memory_space<any>>
        %163 = tpu.memref_squeeze %162 : memref<1x128xf32, #tpu.memory_space<any>> -> memref<128xf32, #tpu.memory_space<any>>
        %c0_i32_91 = arith.constant 0 : i32
        %164 = tpu.memref_slice %arg10[%156, %c0_i32_91] : memref<8x128xf32, #tpu.memory_space<vmem>> -> memref<1x128xf32, #tpu.memory_space<vmem>>
        %165 = tpu.memref_squeeze %164 : memref<1x128xf32, #tpu.memory_space<vmem>> -> memref<128xf32, #tpu.memory_space<vmem>>
        %166 = tpu.memref_slice %arg11[%145] : memref<8x!tpu.dma_semaphore, #tpu.memory_space<semaphore_mem>> -> memref<1x!tpu.dma_semaphore, #tpu.memory_space<semaphore_mem>>
        %167 = tpu.memref_squeeze %166 : memref<1x!tpu.dma_semaphore, #tpu.memory_space<semaphore_mem>> -> memref<!tpu.dma_semaphore, #tpu.memory_space<semaphore_mem>>
        tpu.enqueue_dma source(%163 : memref<128xf32, #tpu.memory_space<any>>) target(%165 : memref<128xf32, #tpu.memory_space<vmem>>) target_semaphore(%167 : memref<!tpu.dma_semaphore, #tpu.memory_space<semaphore_mem>>)
      } else {
      }
    }
    %c8_i32_59 = arith.constant 8 : i32
    %c0_60 = arith.constant 0 : index
    %c0_61 = arith.constant 0 : index
    %107 = vector.load %arg10[%c0_60, %c0_61] : memref<8x128xf32, #tpu.memory_space<vmem>>, vector<8x128xf32>
    %108 = arith.addf %105, %107 : vector<8x128xf32>
    %cst = arith.constant dense<0.000000e+00> : vector<8xf32>
    %109 = vector.multi_reduction <add>, %108, %cst [1] : vector<8x128xf32> to vector<8xf32>
    %110 = vector.shape_cast %109 : vector<8xf32> to vector<8x1xf32>
    %cst_62 = arith.constant 1.280000e+02 : f32
    %111 = vector.broadcast %cst_62 : f32 to vector<8x1xf32>
    %112 = arith.divf %110, %111 : vector<8x1xf32>
    %113 = vector.broadcast %112 : vector<8x1xf32> to vector<8x128xf32>
    %114 = arith.subf %108, %113 : vector<8x128xf32>
    %115 = arith.mulf %114, %114 : vector<8x128xf32>
    %cst_63 = arith.constant dense<0.000000e+00> : vector<8xf32>
    %116 = vector.multi_reduction <add>, %115, %cst_63 [1] : vector<8x128xf32> to vector<8xf32>
    %117 = vector.shape_cast %116 : vector<8xf32> to vector<8x1xf32>
    %cst_64 = arith.constant 1.280000e+02 : f32
    %118 = vector.broadcast %cst_64 : f32 to vector<8x1xf32>
    %119 = arith.divf %117, %118 : vector<8x1xf32>
    %cst_65 = arith.constant 9.99999974E-6 : f32
    %120 = vector.broadcast %cst_65 : f32 to vector<8x1xf32>
    %121 = arith.addf %119, %120 : vector<8x1xf32>
    %122 = math.rsqrt %121 : vector<8x1xf32>
    %123 = vector.broadcast %122 : vector<8x1xf32> to vector<8x128xf32>
    %124 = arith.mulf %114, %123 : vector<8x128xf32>
    %c0_66 = arith.constant 0 : index
    %c0_67 = arith.constant 0 : index
    %125 = vector.load %arg7[%c0_66, %c0_67] : memref<1x128xf32, #tpu.memory_space<vmem>>, vector<1x128xf32>
    %126 = vector.broadcast %125 : vector<1x128xf32> to vector<8x128xf32>
    %127 = arith.mulf %124, %126 : vector<8x128xf32>
    %c0_68 = arith.constant 0 : index
    %c0_69 = arith.constant 0 : index
    %128 = vector.load %arg8[%c0_68, %c0_69] : memref<1x128xf32, #tpu.memory_space<vmem>>, vector<1x128xf32>
    %129 = vector.broadcast %128 : vector<1x128xf32> to vector<8x128xf32>
    %130 = arith.addf %127, %129 : vector<8x128xf32>
    %c0_70 = arith.constant 0 : index
    %c0_71 = arith.constant 0 : index
    %c0_72 = arith.constant 0 : index
    %131 = vector.load %arg9[%c0_70, %c0_71, %c0_72] : memref<1x8x128xf32, #tpu.memory_space<vmem>>, vector<1x8x128xf32>
    %132 = vector.shape_cast %131 : vector<1x8x128xf32> to vector<8x128xf32>
    %133 = vector.shape_cast %130 : vector<8x128xf32> to vector<1x8x128xf32>
    tpu.vector_store %arg9[%c0_70, %c0_71, %c0_72], %133 {strides = array<i32>} : memref<1x8x128xf32, #tpu.memory_space<vmem>>, vector<1x8x128xf32>,
    return
  }
  func.func @transform_0(%arg0: i32, %arg1: i32, %arg2: memref<16xi32, #tpu.memory_space<smem>>) -> (i32, i32, i32) {
    %c0_i32 = arith.constant 0 : i32
    %c0_i32_0 = arith.constant 0 : i32
    return %arg0, %arg1, %c0_i32 : i32, i32, i32
  }
  func.func @transform_2(%arg0: i32, %arg1: i32, %arg2: memref<16xi32, #tpu.memory_space<smem>>) -> (i32, i32) {
    %c0_i32 = arith.constant 0 : i32
    %c0_i32_0 = arith.constant 0 : i32
    return %arg1, %c0_i32 : i32, i32
  }
  func.func @transform_3(%arg0: i32, %arg1: i32, %arg2: memref<16xi32, #tpu.memory_space<smem>>) -> (i32, i32) {
    %c0_i32 = arith.constant 0 : i32
    %c0_i32_0 = arith.constant 0 : i32
    %c0_i32_1 = arith.constant 0 : i32
    return %c0_i32, %c0_i32_0 : i32, i32
  }
  func.func @transform_4(%arg0: i32, %arg1: i32, %arg2: memref<16xi32, #tpu.memory_space<smem>>) -> (i32, i32) {
    %c0_i32 = arith.constant 0 : i32
    %c0_i32_0 = arith.constant 0 : i32
    %c0_i32_1 = arith.constant 0 : i32
    return %c0_i32, %c0_i32_0 : i32, i32
  }
  func.func @transform_5(%arg0: i32, %arg1: i32, %arg2: memref<16xi32, #tpu.memory_space<smem>>) -> (i32, i32) {
    %c0_i32 = arith.constant 0 : i32
    %c0_i32_0 = arith.constant 0 : i32
    %c0_i32_1 = arith.constant 0 : i32
    return %c0_i32, %c0_i32_0 : i32, i32
  }
  func.func @transform_6(%arg0: i32, %arg1: i32, %arg2: memref<16xi32, #tpu.memory_space<smem>>) -> (i32, i32, i32) {
    %c0_i32 = arith.constant 0 : i32
    %c0_i32_0 = arith.constant 0 : i32
    return %arg0, %arg1, %c0_i32 : i32, i32, i32
  }
}

</mosaic_0001>

<llo_original>
// kernel: tpu_custom_call.1
$region0: #{tpu_custom_call.1}
  #allocation0 [shape = 'u32[]', space=smem, size = 0x4, offset = 0x4, fixed_abs, tag = 'smem constant byte address 0x4 - core index']
  #allocation1 [shape = 'u32[144,128]{1,0:T(1,128)}', space=vmem, size = 0x12000, scoped, tag = 'internal scratch']
  #allocation2 [shape = 'f32[8,128]{1,0:T(8,128)}', space=vmem, size = 0x1000, scoped, tag = 'scratch operand']
  #allocation3 [shape = 's32[8]{0}', space=sflag, size = 0x20, scoped, tag = 'scratch operand']
  #allocation4 [shape = 's32[1]{0}', space=sflag, size = 0x4, scoped, tag = 'scoped memory for tpu_custom_call.1']
  #allocation5 [shape = 'u8[512]{0}', space=smem, size = 0x200, scoped, tag = 'prefetched SMEM operand 0']
  #allocation8 [shape = 's32[]', space=sflag, size = 0x4, offset = 0, fixed_abs, tag = 'sflag constant byte address 0x0 - dummy sync flag']
  #allocation9 [shape = 's32[]', space=sflag, size = 0x4, offset = 0, fixed_abs, tag = 'sflag constant byte address 0x0 - dummy sync flag']
  #allocation10 [shape = 'u32[]', space=smem, size = 0x4, offset = 0x44, fixed_abs, tag = 'smem constant byte address 0x44 - assertion arg 0']
  #allocation11 [shape = 'u32[]', space=smem, size = 0x4, offset = 0x48, fixed_abs, tag = 'smem constant byte address 0x48 - assertion arg 1']
  #allocation12 [shape = 's32[]', space=sflag, size = 0x4, offset = 0, fixed_abs, tag = 'sflag constant byte address 0x0 - dummy sync flag']
  #allocation13 [shape = 's32[]', space=sflag, size = 0x4, offset = 0, fixed_abs, tag = 'sflag constant byte address 0x0 - dummy sync flag']
  #allocation14 [shape = 's32[]', space=sflag, size = 0x4, offset = 0, fixed_abs, tag = 'sflag constant byte address 0x0 - dummy sync flag']
  #allocation15 [shape = 's32[]', space=sflag, size = 0x4, offset = 0, fixed_abs, tag = 'sflag constant byte address 0x0 - dummy sync flag']
  #allocation16 [shape = 's32[]', space=sflag, size = 0x4, offset = 0, fixed_abs, tag = 'sflag constant byte address 0x0 - dummy sync flag']
  #allocation17 [shape = 's32[]', space=sflag, size = 0x4, offset = 0, fixed_abs, tag = 'sflag constant byte address 0x0 - dummy sync flag']
  #allocation18 [shape = 's32[]', space=sflag, size = 0x4, offset = 0, fixed_abs, tag = 'sflag constant byte address 0x0 - dummy sync flag']
  #allocation19 [shape = 's32[]', space=sflag, size = 0x4, offset = 0, fixed_abs, tag = 'sflag constant byte address 0x0 - dummy sync flag']
  #allocation20 [shape = 's32[]', space=sflag, size = 0x4, offset = 0, fixed_abs, tag = 'sflag constant byte address 0x0 - dummy sync flag']
  #allocation21 [shape = 's32[]', space=sflag, size = 0x4, offset = 0, fixed_abs, tag = 'sflag constant byte address 0x0 - dummy sync flag']
  #allocation22 [shape = 's32[]', space=sflag, size = 0x4, offset = 0, fixed_abs, tag = 'sflag constant byte address 0x0 - dummy sync flag']
  #allocation23 [shape = 's32[]', space=sflag, size = 0x4, offset = 0, fixed_abs, tag = 'sflag constant byte address 0x0 - dummy sync flag']
  #allocation24 [shape = 's32[]', space=sflag, size = 0x4, offset = 0, fixed_abs, tag = 'sflag constant byte address 0x0 - dummy sync flag']
  #allocation25 [shape = 's32[]', space=sflag, size = 0x4, offset = 0, fixed_abs, tag = 'sflag constant byte address 0x0 - dummy sync flag']
  #allocation26 [shape = 's32[]', space=sflag, size = 0x4, offset = 0, fixed_abs, tag = 'sflag constant byte address 0x0 - dummy sync flag']
  #allocation27 [shape = 's32[]', space=sflag, size = 0x4, offset = 0, fixed_abs, tag = 'sflag constant byte address 0x0 - dummy sync flag']
  %s0 = inlined_call_operand.vmem [shape: s32[16], index: 0, kind: input, shape index: {}]
  %s1 = inlined_call_operand.vmem [shape: s32[2,8,1], index: 1, kind: input, shape index: {}]
  %s2 = inlined_call_operand.hbm [shape: f32[50,128], index: 2, kind: input, shape index: {}]
  %s3 = inlined_call_operand.vmem [shape: f32[16,128], index: 3, kind: input, shape index: {}]
  %s4 = inlined_call_operand.vmem [shape: f32[2,128], index: 4, kind: input, shape index: {}]
  %s5 = inlined_call_operand.vmem [shape: f32[1,128], index: 5, kind: input, shape index: {}]
  %s6 = inlined_call_operand.vmem [shape: f32[1,128], index: 6, kind: input, shape index: {}]
  %s7 = inlined_call_operand.hbm [shape: f32[2,8,128], index: 7, kind: output, shape index: {}]
  %s8 = sld [smem:[#allocation0]]
  $region100: #{tpu_custom_call.1} parent=0
    _
  %s10 = ssub.s32 1, %s8
  %s11 = scalar_select 0, %s10, %s8
  %s12 = sshll.u32 %s0, 4
  %s13 = int_to_ptr.vmem [resolvable:$true] %s12
  %15 = dma.vmem_to_smem %s13, 16, [#allocation5], [#allocation4]
  %16 = dma.done [#allocation4], 16
  %17 = sfence
  $region1: #{tpu_custom_call.1} parent=0
    #allocation6 [shape = 'u8[8192]{0}', space=vmem, size = 0x2000, scoped, tag = 'output window, operand 0']
    #allocation7 [shape = 's32[2]{0}', space=sflag, size = 0x8, scoped, tag = 'scoped memory for tpu_custom_call.1']
    %18 = vsyncpa [#allocation7], 0
    %s19 = scalar_lea.sflag [#allocation7], 1
    %20 = vsyncpa %s19, 0
    loop: start=0, step=1, limit=4
    $region2: #{tpu_custom_call.1} parent=1 // loop_pre_header
      _
    $region3: #{tpu_custom_call.1} parent=1 // loop_header
      %s22 = sphi 0, %s26
      %p23 = scmp.ge.s32.totalorder %s22, 4
      %s29 = sphi 0, %s41
      %s30 = sphi 0, %s37
      %s31 = sphi 0, %s29
      %s32 = sphi 0, %s30
      %s33 = sphi 0, %s31
      %s34 = sphi 0, %s32
      %s46 = sphi 0, %s48
      %s49 = sphi 0, %s46
      %s50 = sphi 0, %s49
      %s66 = sphi 0, %s50
      %s72 = sphi 0, %s74
      %s75 = sphi 0, %s72
      %s76 = sphi 0, %s75
      %s92 = sphi 0, %s76
      %s96 = sphi 0, %s96
      %s98 = sphi 0, %s96
      %s99 = sphi 0, %s98
      %s113 = sphi 0, %s99
      %s117 = sphi 0, %s117
      %s119 = sphi 0, %s117
      %s120 = sphi 0, %s119
      %s134 = sphi 0, %s120
      %s138 = sphi 0, %s138
      %s140 = sphi 0, %s138
      %s141 = sphi 0, %s140
      %s155 = sphi 0, %s141
      %s163 = sphi 0, %s165
      %s166 = sphi 0, %s163
      %s167 = sphi 0, %s166
      %s183 = sphi 0, %s167
    $region4: #{tpu_custom_call.1} parent=1 // loop_header_branch
      %25 = sbr.rel (%p23) target = $region8
    $region5: #{tpu_custom_call.1} parent=1 // loop_body
      %s27 = ssub.s32 %s22, 1
      %s28 = ssub.s32 %s22, 2
      %s35 = sadd.s32 1, %s30
      %p36 = scmp.ge.s32.totalorder %s35, 1
      %s37 = scalar_select %p36, 0, %s35
      %s38 = sadd.s32 1, %s29
      %s39 = scalar_select %p36, %s38, %s29
      %p40 = scmp.ge.s32.totalorder %s39, 2
      %s41 = scalar_select %p40, 0, %s39
      %s42 = ssub.s32 %s29, %s41
      %s43 = ssub.s32 %s30, %s37
      %s44 = sor.u32 %s42, %s43
      %p45 = scmp.eq.s32.totalorder %s44, 0
      %s47 = sadd.s32 %s46, 1
      %s48 = scalar_select %p45, %s46, %s47
      %p51 = pneg %p45
      %p52 = scmp.eq.s32.totalorder %s22, 1
      %p53 = por %p51, %p52
      %p54 = scmp.ne.s32.totalorder %s46, %s49
      %p55 = scmp.eq.s32.totalorder %s22, 0
      %p56 = por %p54, %p55
      %p57 = scmp.ne.s32.totalorder %s46, %s49
      %p58 = scmp.eq.s32.totalorder %s27, 1
      %p59 = por %p57, %p58
      %p60 = scmp.ne.s32.totalorder %s49, %s50
      %p61 = scmp.eq.s32.totalorder %s27, 0
      %p62 = por %p60, %p61
      %p63 = scmp.ne.s32.totalorder %s49, %s50
      %p64 = scmp.eq.s32.totalorder %s28, 1
      %p65 = por %p63, %p64
      %p67 = scmp.ne.s32.totalorder %s50, %s66
      %p68 = scmp.eq.s32.totalorder %s28, 0
      %p69 = por %p67, %p68
      %s70 = ssub.s32 %s30, %s37
      %p71 = scmp.eq.s32.totalorder %s70, 0
      %s73 = sadd.s32 %s72, 1
      %s74 = scalar_select %p71, %s72, %s73
      %p77 = pneg %p71
      %p78 = scmp.eq.s32.totalorder %s22, 1
      %p79 = por %p77, %p78
      %p80 = scmp.ne.s32.totalorder %s72, %s75
      %p81 = scmp.eq.s32.totalorder %s22, 0
      %p82 = por %p80, %p81
      %p83 = scmp.ne.s32.totalorder %s72, %s75
      %p84 = scmp.eq.s32.totalorder %s27, 1
      %p85 = por %p83, %p84
      %p86 = scmp.ne.s32.totalorder %s75, %s76
      %p87 = scmp.eq.s32.totalorder %s27, 0
      %p88 = por %p86, %p87
      %p89 = scmp.ne.s32.totalorder %s75, %s76
      %p90 = scmp.eq.s32.totalorder %s28, 1
      %p91 = por %p89, %p90
      %p93 = scmp.ne.s32.totalorder %s76, %s92
      %p94 = scmp.eq.s32.totalorder %s28, 0
      %p95 = por %p93, %p94
      %s97 = sadd.s32 %s96, 1
      %p100 = scmp.eq.s32.totalorder %s22, 1
      %p101 = scmp.ne.s32.totalorder %s96, %s98
      %p102 = scmp.eq.s32.totalorder %s22, 0
      %p103 = por %p101, %p102
      %p104 = scmp.ne.s32.totalorder %s96, %s98
      %p105 = scmp.eq.s32.totalorder %s27, 1
      %p106 = por %p104, %p105
      %p107 = scmp.ne.s32.totalorder %s98, %s99
      %p108 = scmp.eq.s32.totalorder %s27, 0
      %p109 = por %p107, %p108
      %p110 = scmp.ne.s32.totalorder %s98, %s99
      %p111 = scmp.eq.s32.totalorder %s28, 1
      %p112 = por %p110, %p111
      %p114 = scmp.ne.s32.totalorder %s99, %s113
      %p115 = scmp.eq.s32.totalorder %s28, 0
      %p116 = por %p114, %p115
      %s118 = sadd.s32 %s117, 1
      %p121 = scmp.eq.s32.totalorder %s22, 1
      %p122 = scmp.ne.s32.totalorder %s117, %s119
      %p123 = scmp.eq.s32.totalorder %s22, 0
      %p124 = por %p122, %p123
      %p125 = scmp.ne.s32.totalorder %s117, %s119
      %p126 = scmp.eq.s32.totalorder %s27, 1
      %p127 = por %p125, %p126
      %p128 = scmp.ne.s32.totalorder %s119, %s120
      %p129 = scmp.eq.s32.totalorder %s27, 0
      %p130 = por %p128, %p129
      %p131 = scmp.ne.s32.totalorder %s119, %s120
      %p132 = scmp.eq.s32.totalorder %s28, 1
      %p133 = por %p131, %p132
      %p135 = scmp.ne.s32.totalorder %s120, %s134
      %p136 = scmp.eq.s32.totalorder %s28, 0
      %p137 = por %p135, %p136
      %s139 = sadd.s32 %s138, 1
      %p142 = scmp.eq.s32.totalorder %s22, 1
      %p143 = scmp.ne.s32.totalorder %s138, %s140
      %p144 = scmp.eq.s32.totalorder %s22, 0
      %p145 = por %p143, %p144
      %p146 = scmp.ne.s32.totalorder %s138, %s140
      %p147 = scmp.eq.s32.totalorder %s27, 1
      %p148 = por %p146, %p147
      %p149 = scmp.ne.s32.totalorder %s140, %s141
      %p150 = scmp.eq.s32.totalorder %s27, 0
      %p151 = por %p149, %p150
      %p152 = scmp.ne.s32.totalorder %s140, %s141
      %p153 = scmp.eq.s32.totalorder %s28, 1
      %p154 = por %p152, %p153
      %p156 = scmp.ne.s32.totalorder %s141, %s155
      %p157 = scmp.eq.s32.totalorder %s28, 0
      %p158 = por %p156, %p157
      %s159 = ssub.s32 %s29, %s41
      %s160 = ssub.s32 %s30, %s37
      %s161 = sor.u32 %s159, %s160
      %p162 = scmp.eq.s32.totalorder %s161, 0
      %s164 = sadd.s32 %s163, 1
      %s165 = scalar_select %p162, %s163, %s164
      %p168 = pneg %p162
      %p169 = scmp.eq.s32.totalorder %s22, 1
      %p170 = por %p168, %p169
      %p171 = scmp.ne.s32.totalorder %s163, %s166
      %p172 = scmp.eq.s32.totalorder %s22, 0
      %p173 = por %p171, %p172
      %p174 = scmp.ne.s32.totalorder %s163, %s166
      %p175 = scmp.eq.s32.totalorder %s27, 1
      %p176 = por %p174, %p175
      %p177 = scmp.ne.s32.totalorder %s166, %s167
      %p178 = scmp.eq.s32.totalorder %s27, 0
      %p179 = por %p177, %p178
      %p180 = scmp.ne.s32.totalorder %s166, %s167
      %p181 = scmp.eq.s32.totalorder %s28, 1
      %p182 = por %p180, %p181
      %p184 = scmp.ne.s32.totalorder %s167, %s183
      %p185 = scmp.eq.s32.totalorder %s28, 0
      %p186 = por %p184, %p185
      %p187 = scmp.le.s32.totalorder 1, %s22
      %p188 = scmp.lt.s32.totalorder %s22, 3
      %p189 = pnand %p187, %p188
      %p190 = pneg %p189
      // Predicated region
      $region9: #{tpu_custom_call.1} parent=5 // pred_check
        _
      $region10: #{tpu_custom_call.1} parent=5 // pred_check_branch
        %192 = sbr.rel (%p189) target = $region12
      $region11: #{tpu_custom_call.1} parent=5 // pred_region
        %s193 = ssub.s32 %s22, 1
        // Predicated region
        $region13: #{tpu_custom_call.1} parent=11 // pred_check
          %p194 = pneg %p88
        $region14: #{tpu_custom_call.1} parent=11 // pred_check_branch
          %196 = sbr.rel (%p194) target = $region16
        $region15: #{tpu_custom_call.1} parent=11 // pred_region
          %p197 = scmp.lt.s32.totalorder %s32, 1
          %s198 = scalar_select %p197, %s32, 1
          %s199 = smul.addr %s198, 8
          %s200 = scalar_lea.vmem %s3, %s199
        $region16: #{tpu_custom_call.1} parent=11 // pred_fallthru
          _
        // Predicated region
        $region17: #{tpu_custom_call.1} parent=11 // pred_check
          %p201 = pneg %p109
        $region18: #{tpu_custom_call.1} parent=11 // pred_check_branch
          %203 = sbr.rel (%p201) target = $region20
        $region19: #{tpu_custom_call.1} parent=11 // pred_region
          _
        $region20: #{tpu_custom_call.1} parent=11 // pred_fallthru
          _
        // Predicated region
        $region21: #{tpu_custom_call.1} parent=11 // pred_check
          %p204 = pneg %p130
        $region22: #{tpu_custom_call.1} parent=11 // pred_check_branch
          %206 = sbr.rel (%p204) target = $region24
        $region23: #{tpu_custom_call.1} parent=11 // pred_region
          _
        $region24: #{tpu_custom_call.1} parent=11 // pred_fallthru
          _
        // Predicated region
        $region25: #{tpu_custom_call.1} parent=11 // pred_check
          %p207 = pneg %p151
        $region26: #{tpu_custom_call.1} parent=11 // pred_check_branch
          %209 = sbr.rel (%p207) target = $region28
        $region27: #{tpu_custom_call.1} parent=11 // pred_region
          _
        $region28: #{tpu_custom_call.1} parent=11 // pred_fallthru
          _
      $region12: #{tpu_custom_call.1} parent=5 // pred_fallthru
        _
      %p210 = scmp.lt.s32.totalorder %s22, 2
      // Predicated region
      $region29: #{tpu_custom_call.1} parent=5 // pred_check
        %p211 = pneg %p210
      $region30: #{tpu_custom_call.1} parent=5 // pred_check_branch
        %213 = sbr.rel (%p211) target = $region32
      $region31: #{tpu_custom_call.1} parent=5 // pred_region
        // Predicated region
        $region33: #{tpu_custom_call.1} parent=31 // pred_check
          %p214 = pneg %p56
        $region34: #{tpu_custom_call.1} parent=31 // pred_check_branch
          %216 = sbr.rel (%p214) target = $region36
        $region35: #{tpu_custom_call.1} parent=31 // pred_region
          %p217 = scmp.lt.s32.totalorder %s29, 1
          %s218 = scalar_select %p217, %s29, 1
          %p219 = scmp.lt.s32.totalorder %s30, 0
          %s220 = scalar_select %p219, %s30, 0
          %s221 = sadd.s32 %s220, %s218
          %s222 = smul.addr %s221, 8
          %s223 = scalar_lea.vmem %s1, %s222
        $region36: #{tpu_custom_call.1} parent=31 // pred_fallthru
          _
      $region32: #{tpu_custom_call.1} parent=5 // pred_fallthru
        _
      %p224 = scmp.le.s32.totalorder 1, %s22
      %p225 = scmp.lt.s32.totalorder %s22, 3
      %p226 = pnand %p224, %p225
      %p227 = pneg %p226
      // Predicated region
      $region37: #{tpu_custom_call.1} parent=5 // pred_check
        _
      $region38: #{tpu_custom_call.1} parent=5 // pred_check_branch
        %229 = sbr.rel (%p226) target = $region40
      $region39: #{tpu_custom_call.1} parent=5 // pred_region
        %s230 = ssub.s32 %s22, 1
        %p231 = scmp.lt.s32.totalorder %s31, 1
        %s232 = scalar_select %p231, %s31, 1
        %p233 = scmp.lt.s32.totalorder %s32, 0
        %s234 = scalar_select %p233, %s32, 0
        %s235 = sadd.s32 %s234, %s232
        %s236 = smul.addr %s235, 8
        %s237 = scalar_lea.vmem %s1, %s236
        %p238 = pneg %p62
        %p239 = pneg %p59
        %p240 = scmp.lt.s32.totalorder %s32, 1
        %s241 = scalar_select %p240, %s32, 1
        %s242 = smul.addr %s241, 8
        %s243 = scalar_lea.vmem %s3, %s242
        %p244 = pneg %p88
        %p245 = pneg %p85
        %p246 = pneg %p109
        %p247 = pneg %p106
        %p248 = pneg %p130
        %p249 = pneg %p127
        %p250 = pneg %p151
        %p251 = pneg %p148
        %p252 = pneg %p179
        %p253 = pneg %p176
        %s254 = sand.u32 %s166, 1
        %s255 = scalar_lea.sflag [#allocation7], %s254
        %s256 = sand.u32 %s166, 1
        %s257 = smul.addr %s256, 8
        %s258 = scalar_lea.vmem [#allocation6], %s257
        %p259 = scmp.lt.s32.totalorder %s31, 1
        %s260 = scalar_select %p259, %s31, 1
        %p261 = scmp.lt.s32.totalorder %s32, 0
        %s262 = scalar_select %p261, %s32, 0
        %s263 = sadd.s32 %s262, %s260
        %s264 = smul.addr %s263, 8
        %s265 = scalar_lea.vmem %s1, %s264
        %p266 = scmp.lt.s32.totalorder %s32, 1
        %s267 = scalar_select %p266, %s32, 1
        %s268 = smul.addr %s267, 8
        %s269 = scalar_lea.vmem %s3, %s268
        %s270 = smul.u32 %s31, 8
        %s271 = smul.u32 %s32, 8
        %s272 = sadd.s32 %s270, %s271
        %s273 = sld [smem:[#allocation5 + %s272]]
        %p274 = scmp.gt.s32.totalorder %s273, 0
        %s275 = scalar_select %p274, %s273, 0
        %p276 = scmp.lt.s32.totalorder %s275, 49
        %s277 = scalar_select %p276, %s275, 49
        %s278 = smul.addr %s277, 16
        %s279 = scalar_lea.hbm %s2, %s278
        // Predicated region
        $region41: #{tpu_custom_call.1} parent=39 // pred_check
          _
        $region42: #{tpu_custom_call.1} parent=39 // pred_check_branch
          %281 = sbr.rel target = $region44
        $region43: #{tpu_custom_call.1} parent=39 // pred_region
          %282 = sst [smem:[#allocation10]] [#allocation9]
          %283 = sst [smem:[#allocation11]] [#allocation8]
        $region44: #{tpu_custom_call.1} parent=39 // pred_fallthru
          _
        %285 = shalt.err (0)
        %s287 = sshll.u32 [#allocation2], 4
        %s288 = int_to_ptr.vmem [resolvable:$true] %s287
        %290 = dma.hbm_to_vmem [thread:$0]  %s279, 16, %s288, [#allocation3]
        %s291 = sadd.s32 %s272, 1
        %s292 = sld [smem:[#allocation5 + %s291]]
        %p293 = scmp.gt.s32.totalorder %s292, 0
        %s294 = scalar_select %p293, %s292, 0
        %p295 = scmp.lt.s32.totalorder %s294, 49
        %s296 = scalar_select %p295, %s294, 49
        %s297 = smul.addr %s296, 16
        %s298 = scalar_lea.hbm %s2, %s297
        %s299 = scalar_lea.vmem [#allocation2], 1
        %s300 = scalar_lea.sflag [#allocation3], 1
        // Predicated region
        $region45: #{tpu_custom_call.1} parent=39 // pred_check
          _
        $region46: #{tpu_custom_call.1} parent=39 // pred_check_branch
          %302 = sbr.rel target = $region48
        $region47: #{tpu_custom_call.1} parent=39 // pred_region
          %303 = sst [smem:[#allocation10]] [#allocation13]
          %304 = sst [smem:[#allocation11]] [#allocation12]
        $region48: #{tpu_custom_call.1} parent=39 // pred_fallthru
          _
        %306 = shalt.err (0)
        %s308 = sshll.u32 %s299, 4
        %s309 = int_to_ptr.vmem [resolvable:$true] %s308
        %311 = dma.hbm_to_vmem [thread:$0]  %s298, 16, %s309, %s300
        %s312 = sadd.s32 %s272, 2
        %s313 = sld [smem:[#allocation5 + %s312]]
        %p314 = scmp.gt.s32.totalorder %s313, 0
        %s315 = scalar_select %p314, %s313, 0
        %p316 = scmp.lt.s32.totalorder %s315, 49
        %s317 = scalar_select %p316, %s315, 49
        %s318 = smul.addr %s317, 16
        %s319 = scalar_lea.hbm %s2, %s318
        %s320 = scalar_lea.vmem [#allocation2], 2
        %s321 = scalar_lea.sflag [#allocation3], 2
        // Predicated region
        $region49: #{tpu_custom_call.1} parent=39 // pred_check
          _
        $region50: #{tpu_custom_call.1} parent=39 // pred_check_branch
          %323 = sbr.rel target = $region52
        $region51: #{tpu_custom_call.1} parent=39 // pred_region
          %324 = sst [smem:[#allocation10]] [#allocation15]
          %325 = sst [smem:[#allocation11]] [#allocation14]
        $region52: #{tpu_custom_call.1} parent=39 // pred_fallthru
          _
        %327 = shalt.err (0)
        %s329 = sshll.u32 %s320, 4
        %s330 = int_to_ptr.vmem [resolvable:$true] %s329
        %332 = dma.hbm_to_vmem [thread:$0]  %s319, 16, %s330, %s321
        %s333 = sadd.s32 %s272, 3
        %s334 = sld [smem:[#allocation5 + %s333]]
        %p335 = scmp.gt.s32.totalorder %s334, 0
        %s336 = scalar_select %p335, %s334, 0
        %p337 = scmp.lt.s32.totalorder %s336, 49
        %s338 = scalar_select %p337, %s336, 49
        %s339 = smul.addr %s338, 16
        %s340 = scalar_lea.hbm %s2, %s339
        %s341 = scalar_lea.vmem [#allocation2], 3
        %s342 = scalar_lea.sflag [#allocation3], 3
        // Predicated region
        $region53: #{tpu_custom_call.1} parent=39 // pred_check
          _
        $region54: #{tpu_custom_call.1} parent=39 // pred_check_branch
          %344 = sbr.rel target = $region56
        $region55: #{tpu_custom_call.1} parent=39 // pred_region
          %345 = sst [smem:[#allocation10]] [#allocation17]
          %346 = sst [smem:[#allocation11]] [#allocation16]
        $region56: #{tpu_custom_call.1} parent=39 // pred_fallthru
          _
        %348 = shalt.err (0)
        %s350 = sshll.u32 %s341, 4
        %s351 = int_to_ptr.vmem [resolvable:$true] %s350
        %353 = dma.hbm_to_vmem [thread:$0]  %s340, 16, %s351, %s342
        %s354 = sadd.s32 %s272, 4
        %s355 = sld [smem:[#allocation5 + %s354]]
        %p356 = scmp.gt.s32.totalorder %s355, 0
        %s357 = scalar_select %p356, %s355, 0
        %p358 = scmp.lt.s32.totalorder %s357, 49
        %s359 = scalar_select %p358, %s357, 49
        %s360 = smul.addr %s359, 16
        %s361 = scalar_lea.hbm %s2, %s360
        %s362 = scalar_lea.vmem [#allocation2], 4
        %s363 = scalar_lea.sflag [#allocation3], 4
        // Predicated region
        $region57: #{tpu_custom_call.1} parent=39 // pred_check
          _
        $region58: #{tpu_custom_call.1} parent=39 // pred_check_branch
          %365 = sbr.rel target = $region60
        $region59: #{tpu_custom_call.1} parent=39 // pred_region
          %366 = sst [smem:[#allocation10]] [#allocation19]
          %367 = sst [smem:[#allocation11]] [#allocation18]
        $region60: #{tpu_custom_call.1} parent=39 // pred_fallthru
          _
        %369 = shalt.err (0)
        %s371 = sshll.u32 %s362, 4
        %s372 = int_to_ptr.vmem [resolvable:$true] %s371
        %374 = dma.hbm_to_vmem [thread:$0]  %s361, 16, %s372, %s363
        %s375 = sadd.s32 %s272, 5
        %s376 = sld [smem:[#allocation5 + %s375]]
        %p377 = scmp.gt.s32.totalorder %s376, 0
        %s378 = scalar_select %p377, %s376, 0
        %p379 = scmp.lt.s32.totalorder %s378, 49
        %s380 = scalar_select %p379, %s378, 49
        %s381 = smul.addr %s380, 16
        %s382 = scalar_lea.hbm %s2, %s381
        %s383 = scalar_lea.vmem [#allocation2], 5
        %s384 = scalar_lea.sflag [#allocation3], 5
        // Predicated region
        $region61: #{tpu_custom_call.1} parent=39 // pred_check
          _
        $region62: #{tpu_custom_call.1} parent=39 // pred_check_branch
          %386 = sbr.rel target = $region64
        $region63: #{tpu_custom_call.1} parent=39 // pred_region
          %387 = sst [smem:[#allocation10]] [#allocation21]
          %388 = sst [smem:[#allocation11]] [#allocation20]
        $region64: #{tpu_custom_call.1} parent=39 // pred_fallthru
          _
        %390 = shalt.err (0)
        %s392 = sshll.u32 %s383, 4
        %s393 = int_to_ptr.vmem [resolvable:$true] %s392
        %395 = dma.hbm_to_vmem [thread:$0]  %s382, 16, %s393, %s384
        %s396 = sadd.s32 %s272, 6
        %s397 = sld [smem:[#allocation5 + %s396]]
        %p398 = scmp.gt.s32.totalorder %s397, 0
        %s399 = scalar_select %p398, %s397, 0
        %p400 = scmp.lt.s32.totalorder %s399, 49
        %s401 = scalar_select %p400, %s399, 49
        %s402 = smul.addr %s401, 16
        %s403 = scalar_lea.hbm %s2, %s402
        %s404 = scalar_lea.vmem [#allocation2], 6
        %s405 = scalar_lea.sflag [#allocation3], 6
        // Predicated region
        $region65: #{tpu_custom_call.1} parent=39 // pred_check
          _
        $region66: #{tpu_custom_call.1} parent=39 // pred_check_branch
          %407 = sbr.rel target = $region68
        $region67: #{tpu_custom_call.1} parent=39 // pred_region
          %408 = sst [smem:[#allocation10]] [#allocation23]
          %409 = sst [smem:[#allocation11]] [#allocation22]
        $region68: #{tpu_custom_call.1} parent=39 // pred_fallthru
          _
        %411 = shalt.err (0)
        %s413 = sshll.u32 %s404, 4
        %s414 = int_to_ptr.vmem [resolvable:$true] %s413
        %416 = dma.hbm_to_vmem [thread:$0]  %s403, 16, %s414, %s405
        %s417 = sadd.s32 %s272, 7
        %s418 = sld [smem:[#allocation5 + %s417]]
        %p419 = scmp.gt.s32.totalorder %s418, 0
        %s420 = scalar_select %p419, %s418, 0
        %p421 = scmp.lt.s32.totalorder %s420, 49
        %s422 = scalar_select %p421, %s420, 49
        %s423 = smul.addr %s422, 16
        %s424 = scalar_lea.hbm %s2, %s423
        %s425 = scalar_lea.vmem [#allocation2], 7
        %s426 = scalar_lea.sflag [#allocation3], 7
        // Predicated region
        $region69: #{tpu_custom_call.1} parent=39 // pred_check
          _
        $region70: #{tpu_custom_call.1} parent=39 // pred_check_branch
          %428 = sbr.rel target = $region72
        $region71: #{tpu_custom_call.1} parent=39 // pred_region
          %429 = sst [smem:[#allocation10]] [#allocation25]
          %430 = sst [smem:[#allocation11]] [#allocation24]
        $region72: #{tpu_custom_call.1} parent=39 // pred_fallthru
          _
        %432 = shalt.err (0)
        %s434 = sshll.u32 %s425, 4
        %s435 = int_to_ptr.vmem [resolvable:$true] %s434
        %437 = dma.hbm_to_vmem [thread:$0]  %s424, 16, %s435, %s426
        %v438 = vld [vmem:[%s265] sm:$0xff]
        %v439 = vld [vmem:[%s4] sm:$0x1]
        %v440 = vlaneseq
        %v441 = vshrl.u32 %v440, 7
        %v442 = vsub.s32 0, %v441
        %v443 = vrot.slane %v439, %v442
        %vm444 = vcmp.eq.s32.totalorder %v438, 1
        %v445 = vld [vmem:[%s4 + $0x1] sm:$0x1]
        %v446 = vsel %vm444, 1, 0
        %447 = vset.pattern.permute.xlu0 0
        %448 = vperm.xlu0 %447, %v446
        %v449 = vpop.permute.xlu0 %448
        %vm450 = vcmp.eq.s32.totalorder %v449, 1
        %v451 = vlaneseq
        %v452 = vshrl.u32 %v451, 7
        %v453 = vsub.s32 0, %v452
        %v454 = vrot.slane %v445, %v453
        %v455 = vsel %vm450, %v454, %v443
        %v456 = vld [vmem:[%s269] sm:$0xff]
        %v457 = vadd.f32 %v456, %v455
        loop: start=0, step=1, limit=8
        $region73: #{tpu_custom_call.1} parent=39 // loop_pre_header
          _
        $region74: #{tpu_custom_call.1} parent=39 // loop_header
          %s459 = sphi 0, %s463
          %p460 = scmp.ge.s32.totalorder %s459, 8
        $region75: #{tpu_custom_call.1} parent=39 // loop_header_branch
          %462 = sbr.rel (%p460) target = $region79
        $region76: #{tpu_custom_call.1} parent=39 // loop_body
          %p464 = scmp.lt.s32.totalorder %s459, 0
          %s465 = ssub.s32 0, %s459
          %s466 = scalar_select %p464, %s465, %s459
          %s467 = sand.u32 %s466, 7
          %s468 = ssub.s32 0, %s467
          %s469 = scalar_select %p464, %s468, %s467
          %p470 = scmp.ne.s32.totalorder %s469, 0
          %p471 = scmp.lt.s32.totalorder %s469, 0
          %p472 = pnand %p471, %p470
          %p473 = pneg %p472
          %s474 = sadd.s32 %s469, 8
          %s475 = scalar_select %p473, %s474, %s469
          %s476 = scalar_lea.sflag [#allocation3], %s475
          %478 = dma.done %s476, 16
          %s479 = sadd.s32 %s459, 8
          %p480 = scmp.lt.s32.totalorder %s479, 8
          // Predicated region
          $region80: #{tpu_custom_call.1} parent=76 // pred_check
            %p481 = pneg %p480
          $region81: #{tpu_custom_call.1} parent=76 // pred_check_branch
            %483 = sbr.rel (%p481) target = $region83
          $region82: #{tpu_custom_call.1} parent=76 // pred_region
            %s484 = sadd.s32 %s272, %s479
            %s485 = sld [smem:[#allocation5 + %s484]]
            %p486 = scmp.gt.s32.totalorder %s485, 0
            %s487 = scalar_select %p486, %s485, 0
            %p488 = scmp.lt.s32.totalorder %s487, 49
            %s489 = scalar_select %p488, %s487, 49
            %s490 = smul.addr %s489, 16
            %s491 = scalar_lea.hbm %s2, %s490
            %s492 = scalar_lea.vmem [#allocation2], %s479
            // Predicated region
            $region84: #{tpu_custom_call.1} parent=82 // pred_check
              _
            $region85: #{tpu_custom_call.1} parent=82 // pred_check_branch
              %494 = sbr.rel target = $region87
            $region86: #{tpu_custom_call.1} parent=82 // pred_region
              %495 = sst [smem:[#allocation10]] [#allocation27]
              %496 = sst [smem:[#allocation11]] [#allocation26]
            $region87: #{tpu_custom_call.1} parent=82 // pred_fallthru
              _
            %498 = shalt.err (0)
            %s500 = sshll.u32 %s492, 4
            %s501 = int_to_ptr.vmem [resolvable:$true] %s500
            %503 = dma.hbm_to_vmem [thread:$0]  %s491, 16, %s501, %s476
          $region83: #{tpu_custom_call.1} parent=76 // pred_fallthru
            _
        $region77: #{tpu_custom_call.1} parent=39 // loop_footer
          %s463 = sadd.s32 1, %s459
        $region78: #{tpu_custom_call.1} parent=39 // loop_footer_branch
          %458 = sbr.rel target = $region74
        $region79: #{tpu_custom_call.1} parent=39 // loop_exit
          _
        %v504 = vld [vmem:[#allocation2] sm:$0xff]
        %v505 = vadd.f32 %v457, %v504
        %506 = vadd.xlane.f32.xlu0 %v505
        %v507 = vpop.xlane.xlu0 %506
        %v508 = vrcp.pop 128.0
        %v509 = vmul.f32 %v507, %v508
        %v510 = vsub.f32 %v505, %v509
        %v511 = vmul.f32 %v510, %v510
        %512 = vadd.xlane.f32.xlu0 %v511
        %v513 = vpop.xlane.xlu0 %512
        %v514 = vmul.f32 %v513, %v508
        %v515 = vadd.f32 %v514, 1e-05
        %v516 = vrsqrt.pop %v515
        %v517 = vmul.f32 %v510, %v516
        %v518 = vld [vmem:[%s5] sm:$0x1]
        %v520 = vlaneseq
        %v521 = vshrl.u32 %v520, 7
        %v522 = vsub.s32 0, %v521
        %v523 = vrot.slane %v518, %v522
        %v525 = vmul.f32 %v517, %v523
        %v526 = vld [vmem:[%s6] sm:$0x1]
        %v528 = vlaneseq
        %v529 = vshrl.u32 %v528, 7
        %v530 = vsub.s32 0, %v529
        %v531 = vrot.slane %v526, %v530
        %v533 = vadd.f32 %v525, %v531
        %534 = vst [vmem:[%s258] sm:$0xff] %v533
        %s535 = sand.u32 %s166, 1
        %s536 = scalar_lea.sflag [#allocation7], %s535
        %s537 = sand.u32 %s166, 1
        %s538 = smul.addr %s537, 8
        %s539 = scalar_lea.vmem [#allocation6], %s538
        // Predicated region
        $region88: #{tpu_custom_call.1} parent=39 // pred_check
          %p540 = pneg %p176
        $region89: #{tpu_custom_call.1} parent=39 // pred_check_branch
          %542 = sbr.rel (%p540) target = $region91
        $region90: #{tpu_custom_call.1} parent=39 // pred_region
          %s544 = ssub.s32 128, 128
          %545 = vsyncadd %s536, %s544
          %s546 = sadd.s32 %s32, %s31
          %s547 = smul.addr %s546, 128
          %s548 = scalar_lea.hbm %s7, %s547
          %s550 = sshll.u32 %s539, 4
          %s551 = int_to_ptr.vmem [resolvable:$true] %s550
          %553 = dma.vmem_to_hbm [thread:$0]  %s551, 128, %s548, %s536
        $region91: #{tpu_custom_call.1} parent=39 // pred_fallthru
          _
      $region40: #{tpu_custom_call.1} parent=5 // pred_fallthru
        _
      %p554 = scmp.le.s32.totalorder 2, %s22
      // Predicated region
      $region92: #{tpu_custom_call.1} parent=5 // pred_check
        %p555 = pneg %p554
      $region93: #{tpu_custom_call.1} parent=5 // pred_check_branch
        %557 = sbr.rel (%p555) target = $region95
      $region94: #{tpu_custom_call.1} parent=5 // pred_region
        %s558 = ssub.s32 %s22, 2
        // Predicated region
        $region96: #{tpu_custom_call.1} parent=94 // pred_check
          %p559 = pneg %p182
        $region97: #{tpu_custom_call.1} parent=94 // pred_check_branch
          %561 = sbr.rel (%p559) target = $region99
        $region98: #{tpu_custom_call.1} parent=94 // pred_region
          %s562 = sand.u32 %s167, 1
          %s563 = scalar_lea.sflag [#allocation7], %s562
          %s564 = sand.u32 %s167, 1
          %s565 = smul.addr %s564, 8
          %s566 = scalar_lea.vmem [#allocation6], %s565
          %567 = dma.done %s563, 128
        $region99: #{tpu_custom_call.1} parent=94 // pred_fallthru
          _
      $region95: #{tpu_custom_call.1} parent=5 // pred_fallthru
        _
    $region6: #{tpu_custom_call.1} parent=1 // loop_footer
      %s26 = sadd.s32 1, %s22
    $region7: #{tpu_custom_call.1} parent=1 // loop_footer_branch
      %21 = sbr.rel target = $region3
    $region8: #{tpu_custom_call.1} parent=1 // loop_exit
      _
    %568 = vsyncpa [#allocation7], 1
    %s569 = scalar_lea.sflag [#allocation7], 1
    %570 = vsyncpa %s569, 1
  %571 = vsyncmov [#allocation3]
  %s572 = vpop.sfrf %571
  %p573 = scmp.eq.s32.totalorder %s572, 0
  %p574 = pneg %p573
  %576 = shalt.err (%p574)
  %s577 = scalar_lea.sflag [#allocation3], 1
  %578 = vsyncmov %s577
  %s579 = vpop.sfrf %578
  %p580 = scmp.eq.s32.totalorder %s579, 0
  %p581 = pneg %p580
  %583 = shalt.err (%p581)
  %s584 = scalar_lea.sflag [#allocation3], 2
  %585 = vsyncmov %s584
  %s586 = vpop.sfrf %585
  %p587 = scmp.eq.s32.totalorder %s586, 0
  %p588 = pneg %p587
  %590 = shalt.err (%p588)
  %s591 = scalar_lea.sflag [#allocation3], 3
  %592 = vsyncmov %s591
  %s593 = vpop.sfrf %592
  %p594 = scmp.eq.s32.totalorder %s593, 0
  %p595 = pneg %p594
  %597 = shalt.err (%p595)
  %s598 = scalar_lea.sflag [#allocation3], 4
  %599 = vsyncmov %s598
  %s600 = vpop.sfrf %599
  %p601 = scmp.eq.s32.totalorder %s600, 0
  %p602 = pneg %p601
  %604 = shalt.err (%p602)
  %s605 = scalar_lea.sflag [#allocation3], 5
  %606 = vsyncmov %s605
  %s607 = vpop.sfrf %606
  %p608 = scmp.eq.s32.totalorder %s607, 0
  %p609 = pneg %p608
  %611 = shalt.err (%p609)
  %s612 = scalar_lea.sflag [#allocation3], 6
  %613 = vsyncmov %s612
  %s614 = vpop.sfrf %613
  %p615 = scmp.eq.s32.totalorder %s614, 0
  %p616 = pneg %p615
  %618 = shalt.err (%p616)
  %s619 = scalar_lea.sflag [#allocation3], 7
  %620 = vsyncmov %s619
  %s621 = vpop.sfrf %620
  %p622 = scmp.eq.s32.totalorder %s621, 0
  %p623 = pneg %p622
  %625 = shalt.err (%p623)

</llo_original>
